<compile_context>
chip_gen: v7x
topology: tpu7x:2x2x1
jax: 0.10.0
libtpu: 0.0.40
codegen_flags: <defaults>
</compile_context>

<pallas_src>
import jax
import jax.numpy as jnp
import numpy as np
from jax.experimental import pallas as pl
from jax.experimental.pallas import tpu as pltpu


def _make_rope_kernel(d2: int, D: int):
    """Build a RoPE kernel specialized for rotary half-width d2 and headdim D."""
    # Fast path: rotary covers the whole head and the head dim is lane-dense.
    use_roll = (D == 2 * d2) and (D % 128 == 0)

    def kernel(cos_ref, sin_ref, q_ref, k_ref, qo_ref, ko_ref):
        # cos_ref / sin_ref: (tS, D) float32 in "full-width" layout
        #   cos_full   = [cos | cos | 1...1]
        #   sin_signed = [-sin | sin | 0...0]
        cos = cos_ref[...][:, None, :]          # (tS, 1, D) -> broadcast over heads
        sin = sin_ref[...][:, None, :]

        def rotate(x_ref, o_ref):
            x = x_ref[0].astype(jnp.float32)    # (tS, H, D)
            if use_roll:
                # per-head circular shift by d2 along lanes (XLU, ~free)
                rolled = pltpu.roll(x, shift=d2, axis=2)
            else:
                # General fallback: build [x2 | x1 | tail] explicitly.
                pieces = [x[:, :, d2:2 * d2], x[:, :, :d2]]
                if D > 2 * d2:
                    pieces.append(x[:, :, 2 * d2:])   # contents irrelevant: sin==0 there
                rolled = jnp.concatenate(pieces, axis=-1)
            # single full-width store: [x1*c - x2*s | x2*c + x1*s | tail]
            o_ref[...] = (x * cos + rolled * sin)[None].astype(o_ref.dtype)

        rotate(q_ref, qo_ref)
        rotate(k_ref, ko_ref)

    return kernel


def _pick_seq_tile(S, H, D, itemsize, max_ts=1024, vmem_budget=20 << 20):
    """Largest sequence tile that divides S, <= max_ts, and fits the VMEM budget."""
    # 4 q/k io tensors x 2 pipeline buffers (native dtype) + ~4 f32 temps + cos/sin blocks
    per_row = H * D * (8 * itemsize + 16) + 4 * D * 4
    ts = max(1, min(S, max_ts, vmem_budget // per_row))
    while S % ts:
        ts -= 1
    return ts


class FlashRotaryEmbedding:
    """JAX/Pallas port of the FlashRotaryEmbedding forward pass (scale_base=None path)."""

    def __init__(self, dim, base=10000.0, interleaved=False, scale_base=None,
                 scaling_factor=1.0, pos_idx_in_fp32=True):
        assert scale_base is None, "forward() asserts False for the XPos path in the reference"
        # TODO(synk): interleaved (GPT-J style, even/odd pairs) variant not implemented.
        assert not interleaved
        self.dim = dim
        self.base = float(base)
        self.scaling_factor = scaling_factor
        self.pos_idx_in_fp32 = pos_idx_in_fp32
        # persistent buffer equivalent (deterministic, no checkpoint load)
        self.inv_freq = 1.0 / (self.base ** (
            jnp.arange(0, dim, 2, dtype=jnp.float32) / dim))

    def _cos_sin(self, seqlen):
        # Kept in float32 (avoids bf16 double-rounding); only (seqlen, dim//2) so cheap.
        if self.pos_idx_in_fp32:
            t = jnp.arange(seqlen, dtype=jnp.float32) / self.scaling_factor
            inv_freq = self.inv_freq.astype(jnp.float32)
        else:
            t = jnp.arange(seqlen, dtype=self.inv_freq.dtype) / self.scaling_factor
            inv_freq = self.inv_freq
        freqs = jnp.outer(t, inv_freq)                 # (seqlen, dim//2)
        return jnp.cos(freqs).astype(jnp.float32), jnp.sin(freqs).astype(jnp.float32)

    def __call__(self, q, k, seqlen_offset=0):
        B, S, H, D = q.shape
        d2 = self.dim // 2
        cos, sin = self._cos_sin(S + seqlen_offset)
        cos = cos[seqlen_offset:]                      # (S, d2)
        sin = sin[seqlen_offset:]

        # Full-width f32 tables so the kernel writes the whole head in one store.
        tail = D - 2 * d2
        cos_parts = [cos, cos]
        sin_parts = [-sin, sin]
        if tail > 0:
            cos_parts.append(jnp.ones((S, tail), jnp.float32))
            sin_parts.append(jnp.zeros((S, tail), jnp.float32))
        cos_full = jnp.concatenate(cos_parts, axis=-1)     # (S, D)
        sin_signed = jnp.concatenate(sin_parts, axis=-1)   # (S, D)

        tS = _pick_seq_tile(S, H, D, q.dtype.itemsize)
        grid = (B, S // tS)

        qk_spec = pl.BlockSpec((1, tS, H, D), lambda b, s: (b, s, 0, 0))
        cs_spec = pl.BlockSpec((tS, D), lambda b, s: (s, 0))

        dtype_bytes = q.dtype.itemsize
        cost = pl.CostEstimate(
            flops=6 * B * S * H * D,
            transcendentals=0,
            bytes_accessed=4 * B * S * H * D * dtype_bytes + 2 * S * D * 4,
        )

        qo, ko = pl.pallas_call(
            _make_rope_kernel(d2, D),
            out_shape=(jax.ShapeDtypeStruct((B, S, H, D), q.dtype),
                       jax.ShapeDtypeStruct((B, S, H, D), k.dtype)),
            grid=grid,
            in_specs=[cs_spec, cs_spec, qk_spec, qk_spec],
            out_specs=(qk_spec, qk_spec),
            compiler_params=pltpu.CompilerParams(
                dimension_semantics=("parallel", "parallel"),
                vmem_limit_bytes=48 << 20),
            cost_estimate=cost,
        )(cos_full, sin_signed, q, k)
        return qo, ko


def _reference_rope(x, cos, sin):
    # pure-JAX reference (non-interleaved), rotary over first 2*d2 dims
    d2 = cos.shape[-1]
    c = cos[None, :, None, :].astype(jnp.float32)
    s = sin[None, :, None, :].astype(jnp.float32)
    xf = x.astype(jnp.float32)
    x1 = xf[..., :d2]
    x2 = xf[..., d2:2 * d2]
    o1 = x1 * c - x2 * s
    o2 = x2 * c + x1 * s
    out = jnp.concatenate([o1, o2, xf[..., 2 * d2:]], axis=-1)
    return out.astype(x.dtype)


if __name__ == "__main__":
    B, S, H, D = 2, 8, 4, 128
    key = jax.random.PRNGKey(0)
    kq, kk = jax.random.split(key)
    q = jax.random.normal(kq, (B, S, H, D), dtype=jnp.float32)
    k = jax.random.normal(kk, (B, S, H, D), dtype=jnp.float32)

    rope = FlashRotaryEmbedding(dim=D)
    q_out, k_out = rope(q, k, seqlen_offset=0)
    jax.block_until_ready((q_out, k_out))

    # correctness check against pure-JAX reference
    cos, sin = rope._cos_sin(S)
    q_ref = _reference_rope(q, cos, sin)
    k_ref = _reference_rope(k, cos, sin)
    np.testing.assert_allclose(np.asarray(q_out), np.asarray(q_ref), atol=1e-5, rtol=1e-5)
    np.testing.assert_allclose(np.asarray(k_out), np.asarray(k_ref), atol=1e-5, rtol=1e-5)

    print("KERNEL_OK")
</pallas_src>

<mosaic_0001>
module attributes {stable_mosaic.version = 11 : i64} {
  func.func @kernel(%arg0: i32, %arg1: i32, %arg2: memref<8x128xf32, #tpu.memory_space<vmem>>, %arg3: memref<8x128xf32, #tpu.memory_space<vmem>>, %arg4: memref<1x8x4x128xf32, #tpu.memory_space<vmem>>, %arg5: memref<1x8x4x128xf32, #tpu.memory_space<vmem>>, %arg6: memref<1x8x4x128xf32, #tpu.memory_space<vmem>>, %arg7: memref<1x8x4x128xf32, #tpu.memory_space<vmem>>) attributes {dimension_semantics = [#tpu.dimension_semantics<parallel>, #tpu.dimension_semantics<parallel>], iteration_bounds = array<i64: 2, 1>, scalar_prefetch = 0 : i64, scratch_operands = 0 : i64, tpu.core_type = #tpu.core_type<tc>, window_params = [{transform_indices = @transform_0, window_bounds = array<i64: 8, 128>}, {transform_indices = @transform_1, window_bounds = array<i64: 8, 128>}, {transform_indices = @transform_2, window_bounds = array<i64: 1, 8, 4, 128>}, {transform_indices = @transform_3, window_bounds = array<i64: 1, 8, 4, 128>}, {transform_indices = @transform_4, window_bounds = array<i64: 1, 8, 4, 128>}, {transform_indices = @transform_5, window_bounds = array<i64: 1, 8, 4, 128>}]} {
    %c0 = arith.constant 0 : index
    %c0_0 = arith.constant 0 : index
    %0 = vector.load %arg2[%c0, %c0_0] : memref<8x128xf32, #tpu.memory_space<vmem>>, vector<8x128xf32>
    %1 = vector.shape_cast %0 : vector<8x128xf32> to vector<8x1x128xf32>
    %c0_1 = arith.constant 0 : index
    %c0_2 = arith.constant 0 : index
    %2 = vector.load %arg3[%c0_1, %c0_2] : memref<8x128xf32, #tpu.memory_space<vmem>>, vector<8x128xf32>
    %3 = vector.shape_cast %2 : vector<8x128xf32> to vector<8x1x128xf32>
    %c0_3 = arith.constant 0 : index
    %c0_4 = arith.constant 0 : index
    %c0_5 = arith.constant 0 : index
    %c0_6 = arith.constant 0 : index
    %4 = vector.load %arg4[%c0_3, %c0_4, %c0_5, %c0_6] : memref<1x8x4x128xf32, #tpu.memory_space<vmem>>, vector<1x8x4x128xf32>
    %5 = vector.shape_cast %4 : vector<1x8x4x128xf32> to vector<8x4x128xf32>
    %c64_i32 = arith.constant 64 : i32
    %6 = tpu.dynamic_rotate %5 by %c64_i32 dim 2 : vector<8x4x128xf32>, i32 -> vector<8x4x128xf32>
    %7 = vector.broadcast %1 : vector<8x1x128xf32> to vector<8x4x128xf32>
    %8 = arith.mulf %5, %7 : vector<8x4x128xf32>
    %9 = vector.broadcast %3 : vector<8x1x128xf32> to vector<8x4x128xf32>
    %10 = arith.mulf %6, %9 : vector<8x4x128xf32>
    %11 = arith.addf %8, %10 : vector<8x4x128xf32>
    %12 = vector.shape_cast %11 : vector<8x4x128xf32> to vector<1x8x4x128xf32>
    %c0_7 = arith.constant 0 : index
    %c0_8 = arith.constant 0 : index
    %c0_9 = arith.constant 0 : index
    %c0_10 = arith.constant 0 : index
    %13 = vector.load %arg6[%c0_7, %c0_8, %c0_9, %c0_10] : memref<1x8x4x128xf32, #tpu.memory_space<vmem>>, vector<1x8x4x128xf32>
    tpu.vector_store %arg6[%c0_7, %c0_8, %c0_9, %c0_10], %12 {strides = array<i32>} : memref<1x8x4x128xf32, #tpu.memory_space<vmem>>, vector<1x8x4x128xf32>,
    %c0_11 = arith.constant 0 : index
    %c0_12 = arith.constant 0 : index
    %c0_13 = arith.constant 0 : index
    %c0_14 = arith.constant 0 : index
    %14 = vector.load %arg5[%c0_11, %c0_12, %c0_13, %c0_14] : memref<1x8x4x128xf32, #tpu.memory_space<vmem>>, vector<1x8x4x128xf32>
    %15 = vector.shape_cast %14 : vector<1x8x4x128xf32> to vector<8x4x128xf32>
    %c64_i32_15 = arith.constant 64 : i32
    %16 = tpu.dynamic_rotate %15 by %c64_i32_15 dim 2 : vector<8x4x128xf32>, i32 -> vector<8x4x128xf32>
    %17 = vector.broadcast %1 : vector<8x1x128xf32> to vector<8x4x128xf32>
    %18 = arith.mulf %15, %17 : vector<8x4x128xf32>
    %19 = vector.broadcast %3 : vector<8x1x128xf32> to vector<8x4x128xf32>
    %20 = arith.mulf %16, %19 : vector<8x4x128xf32>
    %21 = arith.addf %18, %20 : vector<8x4x128xf32>
    %22 = vector.shape_cast %21 : vector<8x4x128xf32> to vector<1x8x4x128xf32>
    %c0_16 = arith.constant 0 : index
    %c0_17 = arith.constant 0 : index
    %c0_18 = arith.constant 0 : index
    %c0_19 = arith.constant 0 : index
    %23 = vector.load %arg7[%c0_16, %c0_17, %c0_18, %c0_19] : memref<1x8x4x128xf32, #tpu.memory_space<vmem>>, vector<1x8x4x128xf32>
    tpu.vector_store %arg7[%c0_16, %c0_17, %c0_18, %c0_19], %22 {strides = array<i32>} : memref<1x8x4x128xf32, #tpu.memory_space<vmem>>, vector<1x8x4x128xf32>,
    return
  }
  func.func @transform_0(%arg0: i32, %arg1: i32) -> (i32, i32) {
    %c0_i32 = arith.constant 0 : i32
    %c0_i32_0 = arith.constant 0 : i32
    return %arg1, %c0_i32 : i32, i32
  }
  func.func @transform_1(%arg0: i32, %arg1: i32) -> (i32, i32) {
    %c0_i32 = arith.constant 0 : i32
    %c0_i32_0 = arith.constant 0 : i32
    return %arg1, %c0_i32 : i32, i32
  }
  func.func @transform_2(%arg0: i32, %arg1: i32) -> (i32, i32, i32, i32) {
    %c0_i32 = arith.constant 0 : i32
    %c0_i32_0 = arith.constant 0 : i32
    %c0_i32_1 = arith.constant 0 : i32
    return %arg0, %arg1, %c0_i32, %c0_i32_0 : i32, i32, i32, i32
  }
  func.func @transform_3(%arg0: i32, %arg1: i32) -> (i32, i32, i32, i32) {
    %c0_i32 = arith.constant 0 : i32
    %c0_i32_0 = arith.constant 0 : i32
    %c0_i32_1 = arith.constant 0 : i32
    return %arg0, %arg1, %c0_i32, %c0_i32_0 : i32, i32, i32, i32
  }
  func.func @transform_4(%arg0: i32, %arg1: i32) -> (i32, i32, i32, i32) {
    %c0_i32 = arith.constant 0 : i32
    %c0_i32_0 = arith.constant 0 : i32
    %c0_i32_1 = arith.constant 0 : i32
    return %arg0, %arg1, %c0_i32, %c0_i32_0 : i32, i32, i32, i32
  }
  func.func @transform_5(%arg0: i32, %arg1: i32) -> (i32, i32, i32, i32) {
    %c0_i32 = arith.constant 0 : i32
    %c0_i32_0 = arith.constant 0 : i32
    %c0_i32_1 = arith.constant 0 : i32
    return %arg0, %arg1, %c0_i32, %c0_i32_0 : i32, i32, i32, i32
  }
}

</mosaic_0001>

<llo_original>
// kernel: tpu_custom_call.1
$region0: #{tpu_custom_call.1}
  #allocation0 [shape = 'u32[]', space=smem, size = 0x4, offset = 0x4, fixed_abs, tag = 'smem constant byte address 0x4 - core index']
  #allocation1 [shape = 'u32[144,128]{1,0:T(1,128)}', space=vmem, size = 0x12000, scoped, tag = 'internal scratch']
  %s0 = inlined_call_operand.hbm [shape: f32[8,128], index: 0, kind: input, shape index: {}]
  %s1 = inlined_call_operand.hbm [shape: f32[8,128], index: 1, kind: input, shape index: {}]
  %s2 = inlined_call_operand.hbm [shape: f32[2,8,4,128], index: 2, kind: input, shape index: {}]
  %s3 = inlined_call_operand.hbm [shape: f32[2,8,4,128], index: 3, kind: input, shape index: {}]
  %s4 = inlined_call_operand.hbm [shape: f32[2,8,4,128], index: 4, kind: output, shape index: {0}]
  %s5 = inlined_call_operand.hbm [shape: f32[2,8,4,128], index: 5, kind: output, shape index: {1}]
  %6 = xla_tuple %s4, %s5
  %s7 = sld [smem:[#allocation0]]
  $region73: #{tpu_custom_call.1} parent=0
    _
  %s9 = ssub.s32 1, %s7
  %s10 = scalar_select 0, %s9, %s7
  $region1: #{tpu_custom_call.1} parent=0
    #allocation2 [shape = 'u8[4096]{0}', space=vmem, size = 0x1000, scoped, tag = 'input window, operand 0, single buffered']
    #allocation3 [shape = 's32[2]{0}', space=sflag, size = 0x8, scoped, tag = 'scoped memory for tpu_custom_call.1']
    #allocation4 [shape = 's32[2]{0}', space=sflag, size = 0x8, scoped, tag = 'scoped memory for tpu_custom_call.1']
    #allocation5 [shape = 'u8[4096]{0}', space=vmem, size = 0x1000, scoped, tag = 'input window, operand 1, single buffered']
    #allocation6 [shape = 's32[1]{0}', space=sflag, size = 0x4, scoped, tag = 'scoped memory for tpu_custom_call.1']
    #allocation7 [shape = 'u8[32768]{0}', space=vmem, size = 0x8000, scoped, tag = 'input window, operand 2']
    #allocation8 [shape = 'u8[32768]{0}', space=vmem, size = 0x8000, scoped, tag = 'input window, operand 3']
    #allocation9 [shape = 'u8[32768]{0}', space=vmem, size = 0x8000, scoped, tag = 'output window, operand 0']
    #allocation10 [shape = 'u8[32768]{0}', space=vmem, size = 0x8000, scoped, tag = 'output window, operand 1']
    #allocation11 [shape = 's32[2]{0}', space=sflag, size = 0x8, scoped, tag = 'scoped memory for tpu_custom_call.1']
    %11 = vsyncpa [#allocation3], 0
    %12 = vsyncpa [#allocation6], 0
    %13 = vsyncpa [#allocation4], 0
    %s14 = scalar_lea.sflag [#allocation4], 1
    %15 = vsyncpa %s14, 0
    %16 = vsyncpa [#allocation11], 0
    %s17 = scalar_lea.sflag [#allocation11], 1
    %18 = vsyncpa %s17, 0
    loop: start=0, step=1, limit=4
    $region2: #{tpu_custom_call.1} parent=1 // loop_pre_header
      _
    $region3: #{tpu_custom_call.1} parent=1 // loop_header
      %s20 = sphi 0, %s24
      %p21 = scmp.ge.s32.totalorder %s20, 4
      %s27 = sphi 0, %s39
      %s28 = sphi 0, %s35
      %s29 = sphi 0, %s27
      %s30 = sphi 0, %s28
      %s31 = sphi 0, %s29
      %s32 = sphi 0, %s30
      %s42 = sphi 0, %s44
      %s45 = sphi 0, %s42
      %s46 = sphi 0, %s45
      %s62 = sphi 0, %s46
      %s68 = sphi 0, %s70
      %s71 = sphi 0, %s68
      %s72 = sphi 0, %s71
      %s88 = sphi 0, %s72
      %s96 = sphi 0, %s98
      %s99 = sphi 0, %s96
      %s100 = sphi 0, %s99
      %s116 = sphi 0, %s100
      %s124 = sphi 0, %s126
      %s127 = sphi 0, %s124
      %s128 = sphi 0, %s127
      %s144 = sphi 0, %s128
      %s152 = sphi 0, %s154
      %s155 = sphi 0, %s152
      %s156 = sphi 0, %s155
      %s172 = sphi 0, %s156
      %s180 = sphi 0, %s182
      %s183 = sphi 0, %s180
      %s184 = sphi 0, %s183
      %s200 = sphi 0, %s184
    $region4: #{tpu_custom_call.1} parent=1 // loop_header_branch
      %23 = sbr.rel (%p21) target = $region8
    $region5: #{tpu_custom_call.1} parent=1 // loop_body
      %s25 = ssub.s32 %s20, 1
      %s26 = ssub.s32 %s20, 2
      %s33 = sadd.s32 1, %s28
      %p34 = scmp.ge.s32.totalorder %s33, 1
      %s35 = scalar_select %p34, 0, %s33
      %s36 = sadd.s32 1, %s27
      %s37 = scalar_select %p34, %s36, %s27
      %p38 = scmp.ge.s32.totalorder %s37, 2
      %s39 = scalar_select %p38, 0, %s37
      %s40 = ssub.s32 %s28, %s35
      %p41 = scmp.eq.s32.totalorder %s40, 0
      %s43 = sadd.s32 %s42, 1
      %s44 = scalar_select %p41, %s42, %s43
      %p47 = pneg %p41
      %p48 = scmp.eq.s32.totalorder %s20, 1
      %p49 = por %p47, %p48
      %p50 = scmp.ne.s32.totalorder %s42, %s45
      %p51 = scmp.eq.s32.totalorder %s20, 0
      %p52 = por %p50, %p51
      %p53 = scmp.ne.s32.totalorder %s42, %s45
      %p54 = scmp.eq.s32.totalorder %s25, 1
      %p55 = por %p53, %p54
      %p56 = scmp.ne.s32.totalorder %s45, %s46
      %p57 = scmp.eq.s32.totalorder %s25, 0
      %p58 = por %p56, %p57
      %p59 = scmp.ne.s32.totalorder %s45, %s46
      %p60 = scmp.eq.s32.totalorder %s26, 1
      %p61 = por %p59, %p60
      %p63 = scmp.ne.s32.totalorder %s46, %s62
      %p64 = scmp.eq.s32.totalorder %s26, 0
      %p65 = por %p63, %p64
      %s66 = ssub.s32 %s28, %s35
      %p67 = scmp.eq.s32.totalorder %s66, 0
      %s69 = sadd.s32 %s68, 1
      %s70 = scalar_select %p67, %s68, %s69
      %p73 = pneg %p67
      %p74 = scmp.eq.s32.totalorder %s20, 1
      %p75 = por %p73, %p74
      %p76 = scmp.ne.s32.totalorder %s68, %s71
      %p77 = scmp.eq.s32.totalorder %s20, 0
      %p78 = por %p76, %p77
      %p79 = scmp.ne.s32.totalorder %s68, %s71
      %p80 = scmp.eq.s32.totalorder %s25, 1
      %p81 = por %p79, %p80
      %p82 = scmp.ne.s32.totalorder %s71, %s72
      %p83 = scmp.eq.s32.totalorder %s25, 0
      %p84 = por %p82, %p83
      %p85 = scmp.ne.s32.totalorder %s71, %s72
      %p86 = scmp.eq.s32.totalorder %s26, 1
      %p87 = por %p85, %p86
      %p89 = scmp.ne.s32.totalorder %s72, %s88
      %p90 = scmp.eq.s32.totalorder %s26, 0
      %p91 = por %p89, %p90
      %s92 = ssub.s32 %s27, %s39
      %s93 = ssub.s32 %s28, %s35
      %s94 = sor.u32 %s92, %s93
      %p95 = scmp.eq.s32.totalorder %s94, 0
      %s97 = sadd.s32 %s96, 1
      %s98 = scalar_select %p95, %s96, %s97
      %p101 = pneg %p95
      %p102 = scmp.eq.s32.totalorder %s20, 1
      %p103 = por %p101, %p102
      %p104 = scmp.ne.s32.totalorder %s96, %s99
      %p105 = scmp.eq.s32.totalorder %s20, 0
      %p106 = por %p104, %p105
      %p107 = scmp.ne.s32.totalorder %s96, %s99
      %p108 = scmp.eq.s32.totalorder %s25, 1
      %p109 = por %p107, %p108
      %p110 = scmp.ne.s32.totalorder %s99, %s100
      %p111 = scmp.eq.s32.totalorder %s25, 0
      %p112 = por %p110, %p111
      %p113 = scmp.ne.s32.totalorder %s99, %s100
      %p114 = scmp.eq.s32.totalorder %s26, 1
      %p115 = por %p113, %p114
      %p117 = scmp.ne.s32.totalorder %s100, %s116
      %p118 = scmp.eq.s32.totalorder %s26, 0
      %p119 = por %p117, %p118
      %s120 = ssub.s32 %s27, %s39
      %s121 = ssub.s32 %s28, %s35
      %s122 = sor.u32 %s120, %s121
      %p123 = scmp.eq.s32.totalorder %s122, 0
      %s125 = sadd.s32 %s124, 1
      %s126 = scalar_select %p123, %s124, %s125
      %p129 = pneg %p123
      %p130 = scmp.eq.s32.totalorder %s20, 1
      %p131 = por %p129, %p130
      %p132 = scmp.ne.s32.totalorder %s124, %s127
      %p133 = scmp.eq.s32.totalorder %s20, 0
      %p134 = por %p132, %p133
      %p135 = scmp.ne.s32.totalorder %s124, %s127
      %p136 = scmp.eq.s32.totalorder %s25, 1
      %p137 = por %p135, %p136
      %p138 = scmp.ne.s32.totalorder %s127, %s128
      %p139 = scmp.eq.s32.totalorder %s25, 0
      %p140 = por %p138, %p139
      %p141 = scmp.ne.s32.totalorder %s127, %s128
      %p142 = scmp.eq.s32.totalorder %s26, 1
      %p143 = por %p141, %p142
      %p145 = scmp.ne.s32.totalorder %s128, %s144
      %p146 = scmp.eq.s32.totalorder %s26, 0
      %p147 = por %p145, %p146
      %s148 = ssub.s32 %s27, %s39
      %s149 = ssub.s32 %s28, %s35
      %s150 = sor.u32 %s148, %s149
      %p151 = scmp.eq.s32.totalorder %s150, 0
      %s153 = sadd.s32 %s152, 1
      %s154 = scalar_select %p151, %s152, %s153
      %p157 = pneg %p151
      %p158 = scmp.eq.s32.totalorder %s20, 1
      %p159 = por %p157, %p158
      %p160 = scmp.ne.s32.totalorder %s152, %s155
      %p161 = scmp.eq.s32.totalorder %s20, 0
      %p162 = por %p160, %p161
      %p163 = scmp.ne.s32.totalorder %s152, %s155
      %p164 = scmp.eq.s32.totalorder %s25, 1
      %p165 = por %p163, %p164
      %p166 = scmp.ne.s32.totalorder %s155, %s156
      %p167 = scmp.eq.s32.totalorder %s25, 0
      %p168 = por %p166, %p167
      %p169 = scmp.ne.s32.totalorder %s155, %s156
      %p170 = scmp.eq.s32.totalorder %s26, 1
      %p171 = por %p169, %p170
      %p173 = scmp.ne.s32.totalorder %s156, %s172
      %p174 = scmp.eq.s32.totalorder %s26, 0
      %p175 = por %p173, %p174
      %s176 = ssub.s32 %s27, %s39
      %s177 = ssub.s32 %s28, %s35
      %s178 = sor.u32 %s176, %s177
      %p179 = scmp.eq.s32.totalorder %s178, 0
      %s181 = sadd.s32 %s180, 1
      %s182 = scalar_select %p179, %s180, %s181
      %p185 = pneg %p179
      %p186 = scmp.eq.s32.totalorder %s20, 1
      %p187 = por %p185, %p186
      %p188 = scmp.ne.s32.totalorder %s180, %s183
      %p189 = scmp.eq.s32.totalorder %s20, 0
      %p190 = por %p188, %p189
      %p191 = scmp.ne.s32.totalorder %s180, %s183
      %p192 = scmp.eq.s32.totalorder %s25, 1
      %p193 = por %p191, %p192
      %p194 = scmp.ne.s32.totalorder %s183, %s184
      %p195 = scmp.eq.s32.totalorder %s25, 0
      %p196 = por %p194, %p195
      %p197 = scmp.ne.s32.totalorder %s183, %s184
      %p198 = scmp.eq.s32.totalorder %s26, 1
      %p199 = por %p197, %p198
      %p201 = scmp.ne.s32.totalorder %s184, %s200
      %p202 = scmp.eq.s32.totalorder %s26, 0
      %p203 = por %p201, %p202
      %p204 = scmp.le.s32.totalorder 1, %s20
      %p205 = scmp.lt.s32.totalorder %s20, 3
      %p206 = pnand %p204, %p205
      %p207 = pneg %p206
      // Predicated region
      $region9: #{tpu_custom_call.1} parent=5 // pred_check
        _
      $region10: #{tpu_custom_call.1} parent=5 // pred_check_branch
        %209 = sbr.rel (%p206) target = $region12
      $region11: #{tpu_custom_call.1} parent=5 // pred_region
        %s210 = ssub.s32 %s20, 1
        // Predicated region
        $region13: #{tpu_custom_call.1} parent=11 // pred_check
          %p211 = pneg %p58
        $region14: #{tpu_custom_call.1} parent=11 // pred_check_branch
          %213 = sbr.rel (%p211) target = $region16
        $region15: #{tpu_custom_call.1} parent=11 // pred_region
          %s215 = ssub.s32 128, 128
          %216 = vsyncadd [#allocation3], %s215
          %s217 = smul.addr %s30, 128
          %s218 = scalar_lea.hbm %s0, %s217
          %s220 = sshll.u32 [#allocation2], 4
          %s221 = int_to_ptr.vmem [resolvable:$true] %s220
          %223 = dma.hbm_to_vmem [thread:$0]  %s218, 128, %s221, [#allocation3]
        $region16: #{tpu_custom_call.1} parent=11 // pred_fallthru
          _
        // Predicated region
        $region17: #{tpu_custom_call.1} parent=11 // pred_check
          %p224 = pneg %p84
        $region18: #{tpu_custom_call.1} parent=11 // pred_check_branch
          %226 = sbr.rel (%p224) target = $region20
        $region19: #{tpu_custom_call.1} parent=11 // pred_region
          %s228 = ssub.s32 128, 128
          %229 = vsyncadd [#allocation6], %s228
          %s230 = smul.addr %s30, 128
          %s231 = scalar_lea.hbm %s1, %s230
          %s233 = sshll.u32 [#allocation5], 4
          %s234 = int_to_ptr.vmem [resolvable:$true] %s233
          %236 = dma.hbm_to_vmem [thread:$0]  %s231, 128, %s234, [#allocation6]
        $region20: #{tpu_custom_call.1} parent=11 // pred_fallthru
          _
      $region12: #{tpu_custom_call.1} parent=5 // pred_fallthru
        _
      %p237 = scmp.lt.s32.totalorder %s20, 2
      // Predicated region
      $region21: #{tpu_custom_call.1} parent=5 // pred_check
        %p238 = pneg %p237
      $region22: #{tpu_custom_call.1} parent=5 // pred_check_branch
        %240 = sbr.rel (%p238) target = $region24
      $region23: #{tpu_custom_call.1} parent=5 // pred_region
        // Predicated region
        $region25: #{tpu_custom_call.1} parent=23 // pred_check
          %p241 = pneg %p106
        $region26: #{tpu_custom_call.1} parent=23 // pred_check_branch
          %243 = sbr.rel (%p241) target = $region28
        $region27: #{tpu_custom_call.1} parent=23 // pred_region
          %s244 = sand.u32 %s20, 1
          %s245 = scalar_lea.sflag [#allocation3], %s244
          %s246 = sand.u32 %s96, 1
          %s247 = smul.addr %s246, 32
          %s248 = scalar_lea.vmem [#allocation7], %s247
          %s249 = smul.u32 8, %s28
          %s251 = ssub.s32 512, 512
          %252 = vsyncadd %s245, %s251
          %s253 = smul.addr %s27, 8
          %s254 = sadd.s32 %s249, %s253
          %s255 = smul.addr %s254, 64
          %s256 = scalar_lea.hbm %s2, %s255
          %s257 = sshll.u32 %s248, 4
          %s258 = int_to_ptr.vmem [resolvable:$true] %s257
          %263 = dma.hbm_to_vmem [thread:$0]  %s256, 512, %s258, %s245, 64, 64, 4
        $region28: #{tpu_custom_call.1} parent=23 // pred_fallthru
          _
        // Predicated region
        $region29: #{tpu_custom_call.1} parent=23 // pred_check
          %p264 = pneg %p134
        $region30: #{tpu_custom_call.1} parent=23 // pred_check_branch
          %266 = sbr.rel (%p264) target = $region32
        $region31: #{tpu_custom_call.1} parent=23 // pred_region
          %s267 = sand.u32 %s20, 1
          %s268 = scalar_lea.sflag [#allocation3], %s267
          %s269 = sand.u32 %s124, 1
          %s270 = smul.addr %s269, 32
          %s271 = scalar_lea.vmem [#allocation8], %s270
          %s272 = smul.u32 8, %s28
          %s274 = ssub.s32 512, 512
          %275 = vsyncadd %s268, %s274
          %s276 = smul.addr %s27, 8
          %s277 = sadd.s32 %s272, %s276
          %s278 = smul.addr %s277, 64
          %s279 = scalar_lea.hbm %s3, %s278
          %s280 = sshll.u32 %s271, 4
          %s281 = int_to_ptr.vmem [resolvable:$true] %s280
          %286 = dma.hbm_to_vmem [thread:$0]  %s279, 512, %s281, %s268, 64, 64, 4
        $region32: #{tpu_custom_call.1} parent=23 // pred_fallthru
          _
      $region24: #{tpu_custom_call.1} parent=5 // pred_fallthru
        _
      %p287 = scmp.le.s32.totalorder 1, %s20
      %p288 = scmp.lt.s32.totalorder %s20, 3
      %p289 = pnand %p287, %p288
      %p290 = pneg %p289
      // Predicated region
      $region33: #{tpu_custom_call.1} parent=5 // pred_check
        _
      $region34: #{tpu_custom_call.1} parent=5 // pred_check_branch
        %292 = sbr.rel (%p289) target = $region36
      $region35: #{tpu_custom_call.1} parent=5 // pred_region
        %s293 = ssub.s32 %s20, 1
        // Predicated region
        $region37: #{tpu_custom_call.1} parent=35 // pred_check
          %p294 = pneg %p58
        $region38: #{tpu_custom_call.1} parent=35 // pred_check_branch
          %296 = sbr.rel (%p294) target = $region40
        $region39: #{tpu_custom_call.1} parent=35 // pred_region
          %297 = dma.done [#allocation3], 128
        $region40: #{tpu_custom_call.1} parent=35 // pred_fallthru
          _
        // Predicated region
        $region41: #{tpu_custom_call.1} parent=35 // pred_check
          %p298 = pneg %p84
        $region42: #{tpu_custom_call.1} parent=35 // pred_check_branch
          %300 = sbr.rel (%p298) target = $region44
        $region43: #{tpu_custom_call.1} parent=35 // pred_region
          %301 = dma.done [#allocation6], 128
        $region44: #{tpu_custom_call.1} parent=35 // pred_fallthru
          _
        %s302 = sand.u32 %s25, 1
        %s303 = scalar_lea.sflag [#allocation3], %s302
        %s304 = sand.u32 %s99, 1
        %s305 = smul.addr %s304, 32
        %s306 = scalar_lea.vmem [#allocation7], %s305
        // Predicated region
        $region45: #{tpu_custom_call.1} parent=35 // pred_check
          %p307 = pneg %p112
        $region46: #{tpu_custom_call.1} parent=35 // pred_check_branch
          %309 = sbr.rel (%p307) target = $region48
        $region47: #{tpu_custom_call.1} parent=35 // pred_region
          %310 = dma.done %s303, 512
        $region48: #{tpu_custom_call.1} parent=35 // pred_fallthru
          _
        %s311 = sand.u32 %s25, 1
        %s312 = scalar_lea.sflag [#allocation3], %s311
        %s313 = sand.u32 %s127, 1
        %s314 = smul.addr %s313, 32
        %s315 = scalar_lea.vmem [#allocation8], %s314
        // Predicated region
        $region49: #{tpu_custom_call.1} parent=35 // pred_check
          %p316 = pneg %p140
        $region50: #{tpu_custom_call.1} parent=35 // pred_check_branch
          %318 = sbr.rel (%p316) target = $region52
        $region51: #{tpu_custom_call.1} parent=35 // pred_region
          %319 = dma.done %s312, 512
        $region52: #{tpu_custom_call.1} parent=35 // pred_fallthru
          _
        %p320 = pneg %p58
        %p321 = pneg %p55
        %p322 = pneg %p84
        %p323 = pneg %p81
        %s324 = sand.u32 %s25, 1
        %s325 = scalar_lea.sflag [#allocation3], %s324
        %s326 = sand.u32 %s99, 1
        %s327 = smul.addr %s326, 32
        %s328 = scalar_lea.vmem [#allocation7], %s327
        %p329 = pneg %p112
        %p330 = pneg %p109
        %s331 = sand.u32 %s25, 1
        %s332 = scalar_lea.sflag [#allocation3], %s331
        %s333 = sand.u32 %s127, 1
        %s334 = smul.addr %s333, 32
        %s335 = scalar_lea.vmem [#allocation8], %s334
        %p336 = pneg %p140
        %p337 = pneg %p137
        %p338 = pneg %p168
        %p339 = pneg %p165
        %s340 = sand.u32 %s155, 1
        %s341 = scalar_lea.sflag [#allocation4], %s340
        %s342 = sand.u32 %s155, 1
        %s343 = smul.addr %s342, 32
        %s344 = scalar_lea.vmem [#allocation9], %s343
        %p345 = pneg %p196
        %p346 = pneg %p193
        %s347 = sand.u32 %s183, 1
        %s348 = scalar_lea.sflag [#allocation11], %s347
        %s349 = sand.u32 %s183, 1
        %s350 = smul.addr %s349, 32
        %s351 = scalar_lea.vmem [#allocation10], %s350
        %s352 = smul.u32 8, %s30
        %s353 = smul.u32 8, %s30
        %s354 = smul.u32 8, %s30
        %s355 = smul.u32 8, %s30
        %v356 = vld [vmem:[#allocation2] sm:$0xff]
        %v358 = vcombine.high %v356, %v356
        %v360 = vunpack.c.l.s4 1966171168
        %v361 = vunpack.c.0.s8 %v360
        %v362 = vlaneseq
        %v363 = vshrl.u32 %v362, 7
        %v364 = vsub.s32 %v361, %v363
        %v365 = vrot.slane %v356, %v364
        %v367 = vunpack.c.l.s4 1966171168
        %v368 = vunpack.c.0.s8 %v367
        %v369 = vlaneseq
        %v370 = vshrl.u32 %v369, 7
        %v371 = vsub.s32 %v368, %v370
        %v372 = vrot.slane %v358, %v371
        %v373 = vcombine.high %v365, %v365
        %v374 = vcombine.high %v372, %v372
        %v376 = vunpack.c.l.s4 1966171168
        %v377 = vunpack.c.0.s8 %v376
        %v378 = vlaneseq
        %v379 = vshrl.u32 %v378, 7
        %v380 = vsub.s32 %v377, %v379
        %v381 = vrot.slane %v365, %v380
        %v383 = vunpack.c.l.s4 1966171168
        %v384 = vunpack.c.0.s8 %v383
        %v385 = vlaneseq
        %v386 = vshrl.u32 %v385, 7
        %v387 = vsub.s32 %v384, %v386
        %v388 = vrot.slane %v372, %v387
        %v390 = vunpack.c.l.s4 1966171168
        %v391 = vunpack.c.0.s8 %v390
        %v392 = vlaneseq
        %v393 = vshrl.u32 %v392, 7
        %v394 = vsub.s32 %v391, %v393
        %v395 = vrot.slane %v373, %v394
        %v397 = vunpack.c.l.s4 1966171168
        %v398 = vunpack.c.0.s8 %v397
        %v399 = vlaneseq
        %v400 = vshrl.u32 %v399, 7
        %v401 = vsub.s32 %v398, %v400
        %v402 = vrot.slane %v374, %v401
        %v403 = vcombine.high %v381, %v381
        %v404 = vcombine.high %v388, %v388
        %v405 = vcombine.high %v395, %v395
        %v406 = vcombine.high %v402, %v402
        %v407 = vld [vmem:[#allocation5] sm:$0xff]
        %v409 = vcombine.high %v407, %v407
        %v411 = vunpack.c.l.s4 1966171168
        %v412 = vunpack.c.0.s8 %v411
        %v413 = vlaneseq
        %v414 = vshrl.u32 %v413, 7
        %v415 = vsub.s32 %v412, %v414
        %v416 = vrot.slane %v407, %v415
        %v418 = vunpack.c.l.s4 1966171168
        %v419 = vunpack.c.0.s8 %v418
        %v420 = vlaneseq
        %v421 = vshrl.u32 %v420, 7
        %v422 = vsub.s32 %v419, %v421
        %v423 = vrot.slane %v409, %v422
        %v424 = vcombine.high %v416, %v416
        %v425 = vcombine.high %v423, %v423
        %v427 = vunpack.c.l.s4 1966171168
        %v428 = vunpack.c.0.s8 %v427
        %v429 = vlaneseq
        %v430 = vshrl.u32 %v429, 7
        %v431 = vsub.s32 %v428, %v430
        %v432 = vrot.slane %v416, %v431
        %v434 = vunpack.c.l.s4 1966171168
        %v435 = vunpack.c.0.s8 %v434
        %v436 = vlaneseq
        %v437 = vshrl.u32 %v436, 7
        %v438 = vsub.s32 %v435, %v437
        %v439 = vrot.slane %v423, %v438
        %v441 = vunpack.c.l.s4 1966171168
        %v442 = vunpack.c.0.s8 %v441
        %v443 = vlaneseq
        %v444 = vshrl.u32 %v443, 7
        %v445 = vsub.s32 %v442, %v444
        %v446 = vrot.slane %v424, %v445
        %v448 = vunpack.c.l.s4 1966171168
        %v449 = vunpack.c.0.s8 %v448
        %v450 = vlaneseq
        %v451 = vshrl.u32 %v450, 7
        %v452 = vsub.s32 %v449, %v451
        %v453 = vrot.slane %v425, %v452
        %v454 = vcombine.high %v432, %v432
        %v455 = vcombine.high %v439, %v439
        %v456 = vcombine.high %v446, %v446
        %v457 = vcombine.high %v453, %v453
        %v458 = vld [vmem:[%s306] sm:$0xf]
        %v459 = vld [vmem:[%s306 + $0x4] sm:$0xf]
        %v460 = vld [vmem:[%s306 + $0x8] sm:$0xf]
        %v461 = vld [vmem:[%s306 + $0xc] sm:$0xf]
        %v462 = vld [vmem:[%s306 + $0x10] sm:$0xf]
        %v463 = vld [vmem:[%s306 + $0x14] sm:$0xf]
        %v464 = vld [vmem:[%s306 + $0x18] sm:$0xf]
        %v465 = vld [vmem:[%s306 + $0x1c] sm:$0xf]
        %466 = vrot.lane.b32.xlu0 %v458, 64
        %v467 = vpop.permute.xlu0 %466
        %468 = vrot.lane.b32.xlu0 %v459, 64
        %v469 = vpop.permute.xlu0 %468
        %470 = vrot.lane.b32.xlu0 %v460, 64
        %v471 = vpop.permute.xlu0 %470
        %472 = vrot.lane.b32.xlu0 %v461, 64
        %v473 = vpop.permute.xlu0 %472
        %474 = vrot.lane.b32.xlu0 %v462, 64
        %v475 = vpop.permute.xlu0 %474
        %476 = vrot.lane.b32.xlu0 %v463, 64
        %v477 = vpop.permute.xlu0 %476
        %478 = vrot.lane.b32.xlu0 %v464, 64
        %v479 = vpop.permute.xlu0 %478
        %480 = vrot.lane.b32.xlu0 %v465, 64
        %v481 = vpop.permute.xlu0 %480
        %v482 = vlaneseq
        %v483 = vshrl.u32 %v482, 7
        %v484 = vsub.s32 0, %v483
        %v485 = vrot.slane %v381, %v484
        %v486 = vlaneseq
        %v487 = vshrl.u32 %v486, 7
        %v488 = vsub.s32 0, %v487
        %v489 = vrot.slane %v395, %v488
        %v490 = vlaneseq
        %v491 = vshrl.u32 %v490, 7
        %v492 = vsub.s32 0, %v491
        %v493 = vrot.slane %v403, %v492
        %v494 = vlaneseq
        %v495 = vshrl.u32 %v494, 7
        %v496 = vsub.s32 0, %v495
        %v497 = vrot.slane %v405, %v496
        %v498 = vlaneseq
        %v499 = vshrl.u32 %v498, 7
        %v500 = vsub.s32 0, %v499
        %v501 = vrot.slane %v388, %v500
        %v502 = vlaneseq
        %v503 = vshrl.u32 %v502, 7
        %v504 = vsub.s32 0, %v503
        %v505 = vrot.slane %v402, %v504
        %v506 = vlaneseq
        %v507 = vshrl.u32 %v506, 7
        %v508 = vsub.s32 0, %v507
        %v509 = vrot.slane %v404, %v508
        %v510 = vlaneseq
        %v511 = vshrl.u32 %v510, 7
        %v512 = vsub.s32 0, %v511
        %v513 = vrot.slane %v406, %v512
        %v522 = vmul.f32 %v458, %v485
        %v523 = vmul.f32 %v459, %v489
        %v524 = vmul.f32 %v460, %v493
        %v525 = vmul.f32 %v461, %v497
        %v526 = vmul.f32 %v462, %v501
        %v527 = vmul.f32 %v463, %v505
        %v528 = vmul.f32 %v464, %v509
        %v529 = vmul.f32 %v465, %v513
        %v530 = vlaneseq
        %v531 = vshrl.u32 %v530, 7
        %v532 = vsub.s32 0, %v531
        %v533 = vrot.slane %v432, %v532
        %v534 = vlaneseq
        %v535 = vshrl.u32 %v534, 7
        %v536 = vsub.s32 0, %v535
        %v537 = vrot.slane %v446, %v536
        %v538 = vlaneseq
        %v539 = vshrl.u32 %v538, 7
        %v540 = vsub.s32 0, %v539
        %v541 = vrot.slane %v454, %v540
        %v542 = vlaneseq
        %v543 = vshrl.u32 %v542, 7
        %v544 = vsub.s32 0, %v543
        %v545 = vrot.slane %v456, %v544
        %v546 = vlaneseq
        %v547 = vshrl.u32 %v546, 7
        %v548 = vsub.s32 0, %v547
        %v549 = vrot.slane %v439, %v548
        %v550 = vlaneseq
        %v551 = vshrl.u32 %v550, 7
        %v552 = vsub.s32 0, %v551
        %v553 = vrot.slane %v453, %v552
        %v554 = vlaneseq
        %v555 = vshrl.u32 %v554, 7
        %v556 = vsub.s32 0, %v555
        %v557 = vrot.slane %v455, %v556
        %v558 = vlaneseq
        %v559 = vshrl.u32 %v558, 7
        %v560 = vsub.s32 0, %v559
        %v561 = vrot.slane %v457, %v560
        %v570 = vmul.f32 %v467, %v533
        %v571 = vmul.f32 %v469, %v537
        %v572 = vmul.f32 %v471, %v541
        %v573 = vmul.f32 %v473, %v545
        %v574 = vmul.f32 %v475, %v549
        %v575 = vmul.f32 %v477, %v553
        %v576 = vmul.f32 %v479, %v557
        %v577 = vmul.f32 %v481, %v561
        %v578 = vadd.f32 %v522, %v570
        %v579 = vadd.f32 %v523, %v571
        %v580 = vadd.f32 %v524, %v572
        %v581 = vadd.f32 %v525, %v573
        %v582 = vadd.f32 %v526, %v574
        %v583 = vadd.f32 %v527, %v575
        %v584 = vadd.f32 %v528, %v576
        %v585 = vadd.f32 %v529, %v577
        %586 = vst [vmem:[%s344] sm:$0xf] %v578
        %587 = vst [vmem:[%s344 + $0x4] sm:$0xf] %v579
        %588 = vst [vmem:[%s344 + $0x8] sm:$0xf] %v580
        %589 = vst [vmem:[%s344 + $0xc] sm:$0xf] %v581
        %590 = vst [vmem:[%s344 + $0x10] sm:$0xf] %v582
        %591 = vst [vmem:[%s344 + $0x14] sm:$0xf] %v583
        %592 = vst [vmem:[%s344 + $0x18] sm:$0xf] %v584
        %593 = vst [vmem:[%s344 + $0x1c] sm:$0xf] %v585
        %v594 = vld [vmem:[%s315] sm:$0xf]
        %v595 = vld [vmem:[%s315 + $0x4] sm:$0xf]
        %v596 = vld [vmem:[%s315 + $0x8] sm:$0xf]
        %v597 = vld [vmem:[%s315 + $0xc] sm:$0xf]
        %v598 = vld [vmem:[%s315 + $0x10] sm:$0xf]
        %v599 = vld [vmem:[%s315 + $0x14] sm:$0xf]
        %v600 = vld [vmem:[%s315 + $0x18] sm:$0xf]
        %v601 = vld [vmem:[%s315 + $0x1c] sm:$0xf]
        %602 = vrot.lane.b32.xlu0 %v594, 64
        %v603 = vpop.permute.xlu0 %602
        %604 = vrot.lane.b32.xlu0 %v595, 64
        %v605 = vpop.permute.xlu0 %604
        %606 = vrot.lane.b32.xlu0 %v596, 64
        %v607 = vpop.permute.xlu0 %606
        %608 = vrot.lane.b32.xlu0 %v597, 64
        %v609 = vpop.permute.xlu0 %608
        %610 = vrot.lane.b32.xlu0 %v598, 64
        %v611 = vpop.permute.xlu0 %610
        %612 = vrot.lane.b32.xlu0 %v599, 64
        %v613 = vpop.permute.xlu0 %612
        %614 = vrot.lane.b32.xlu0 %v600, 64
        %v615 = vpop.permute.xlu0 %614
        %616 = vrot.lane.b32.xlu0 %v601, 64
        %v617 = vpop.permute.xlu0 %616
        %v618 = vmul.f32 %v594, %v485
        %v619 = vmul.f32 %v595, %v489
        %v620 = vmul.f32 %v596, %v493
        %v621 = vmul.f32 %v597, %v497
        %v622 = vmul.f32 %v598, %v501
        %v623 = vmul.f32 %v599, %v505
        %v624 = vmul.f32 %v600, %v509
        %v625 = vmul.f32 %v601, %v513
        %v626 = vmul.f32 %v603, %v533
        %v627 = vmul.f32 %v605, %v537
        %v628 = vmul.f32 %v607, %v541
        %v629 = vmul.f32 %v609, %v545
        %v630 = vmul.f32 %v611, %v549
        %v631 = vmul.f32 %v613, %v553
        %v632 = vmul.f32 %v615, %v557
        %v633 = vmul.f32 %v617, %v561
        %v634 = vadd.f32 %v618, %v626
        %v635 = vadd.f32 %v619, %v627
        %v636 = vadd.f32 %v620, %v628
        %v637 = vadd.f32 %v621, %v629
        %v638 = vadd.f32 %v622, %v630
        %v639 = vadd.f32 %v623, %v631
        %v640 = vadd.f32 %v624, %v632
        %v641 = vadd.f32 %v625, %v633
        %642 = vst [vmem:[%s351] sm:$0xf] %v634
        %643 = vst [vmem:[%s351 + $0x4] sm:$0xf] %v635
        %644 = vst [vmem:[%s351 + $0x8] sm:$0xf] %v636
        %645 = vst [vmem:[%s351 + $0xc] sm:$0xf] %v637
        %646 = vst [vmem:[%s351 + $0x10] sm:$0xf] %v638
        %647 = vst [vmem:[%s351 + $0x14] sm:$0xf] %v639
        %648 = vst [vmem:[%s351 + $0x18] sm:$0xf] %v640
        %649 = vst [vmem:[%s351 + $0x1c] sm:$0xf] %v641
        %s650 = sand.u32 %s155, 1
        %s651 = scalar_lea.sflag [#allocation4], %s650
        %s652 = sand.u32 %s155, 1
        %s653 = smul.addr %s652, 32
        %s654 = scalar_lea.vmem [#allocation9], %s653
        %s655 = sand.u32 %s183, 1
        %s656 = scalar_lea.sflag [#allocation11], %s655
        %s657 = sand.u32 %s183, 1
        %s658 = smul.addr %s657, 32
        %s659 = scalar_lea.vmem [#allocation10], %s658
        // Predicated region
        $region53: #{tpu_custom_call.1} parent=35 // pred_check
          %p660 = pneg %p165
        $region54: #{tpu_custom_call.1} parent=35 // pred_check_branch
          %662 = sbr.rel (%p660) target = $region56
        $region55: #{tpu_custom_call.1} parent=35 // pred_region
          %s663 = smul.u32 8, %s30
          %s665 = ssub.s32 512, 512
          %666 = vsyncadd %s651, %s665
          %s667 = smul.addr %s29, 8
          %s668 = sadd.s32 %s663, %s667
          %s669 = smul.addr %s668, 64
          %s670 = scalar_lea.hbm %s4, %s669
          %s671 = sshll.u32 %s654, 4
          %s672 = int_to_ptr.vmem [resolvable:$true] %s671
          %677 = dma.vmem_to_hbm [thread:$0]  %s672, 512, %s670, %s651, 64, 64, 4
        $region56: #{tpu_custom_call.1} parent=35 // pred_fallthru
          _
        // Predicated region
        $region57: #{tpu_custom_call.1} parent=35 // pred_check
          %p678 = pneg %p193
        $region58: #{tpu_custom_call.1} parent=35 // pred_check_branch
          %680 = sbr.rel (%p678) target = $region60
        $region59: #{tpu_custom_call.1} parent=35 // pred_region
          %s681 = smul.u32 8, %s30
          %s683 = ssub.s32 512, 512
          %684 = vsyncadd %s656, %s683
          %s685 = smul.addr %s29, 8
          %s686 = sadd.s32 %s681, %s685
          %s687 = smul.addr %s686, 64
          %s688 = scalar_lea.hbm %s5, %s687
          %s689 = sshll.u32 %s659, 4
          %s690 = int_to_ptr.vmem [resolvable:$true] %s689
          %695 = dma.vmem_to_hbm [thread:$0]  %s690, 512, %s688, %s656, 64, 64, 4
        $region60: #{tpu_custom_call.1} parent=35 // pred_fallthru
          _
      $region36: #{tpu_custom_call.1} parent=5 // pred_fallthru
        _
      %p696 = scmp.le.s32.totalorder 2, %s20
      // Predicated region
      $region61: #{tpu_custom_call.1} parent=5 // pred_check
        %p697 = pneg %p696
      $region62: #{tpu_custom_call.1} parent=5 // pred_check_branch
        %699 = sbr.rel (%p697) target = $region64
      $region63: #{tpu_custom_call.1} parent=5 // pred_region
        %s700 = ssub.s32 %s20, 2
        // Predicated region
        $region65: #{tpu_custom_call.1} parent=63 // pred_check
          %p701 = pneg %p171
        $region66: #{tpu_custom_call.1} parent=63 // pred_check_branch
          %703 = sbr.rel (%p701) target = $region68
        $region67: #{tpu_custom_call.1} parent=63 // pred_region
          %s704 = sand.u32 %s156, 1
          %s705 = scalar_lea.sflag [#allocation4], %s704
          %s706 = sand.u32 %s156, 1
          %s707 = smul.addr %s706, 32
          %s708 = scalar_lea.vmem [#allocation9], %s707
          %709 = dma.done %s705, 512
        $region68: #{tpu_custom_call.1} parent=63 // pred_fallthru
          _
        // Predicated region
        $region69: #{tpu_custom_call.1} parent=63 // pred_check
          %p710 = pneg %p199
        $region70: #{tpu_custom_call.1} parent=63 // pred_check_branch
          %712 = sbr.rel (%p710) target = $region72
        $region71: #{tpu_custom_call.1} parent=63 // pred_region
          %s713 = sand.u32 %s184, 1
          %s714 = scalar_lea.sflag [#allocation11], %s713
          %s715 = sand.u32 %s184, 1
          %s716 = smul.addr %s715, 32
          %s717 = scalar_lea.vmem [#allocation10], %s716
          %718 = dma.done %s714, 512
        $region72: #{tpu_custom_call.1} parent=63 // pred_fallthru
          _
      $region64: #{tpu_custom_call.1} parent=5 // pred_fallthru
        _
    $region6: #{tpu_custom_call.1} parent=1 // loop_footer
      %s24 = sadd.s32 1, %s20
    $region7: #{tpu_custom_call.1} parent=1 // loop_footer_branch
      %19 = sbr.rel target = $region3
    $region8: #{tpu_custom_call.1} parent=1 // loop_exit
      _
    %719 = vsyncpa [#allocation3], 1
    %s720 = scalar_lea.sflag [#allocation3], 1
    %721 = vsyncpa %s720, 1
    %722 = vsyncpa [#allocation6], 1
    %723 = vsyncpa [#allocation4], 1
    %s724 = scalar_lea.sflag [#allocation4], 1
    %725 = vsyncpa %s724, 1
    %726 = vsyncpa [#allocation11], 1
    %s727 = scalar_lea.sflag [#allocation11], 1
    %728 = vsyncpa %s727, 1

</llo_original>
